<compile_context>
chip_gen: v7x
topology: tpu7x:2x2x1
jax: 0.10.0
libtpu: 0.0.40
codegen_flags: <defaults>
</compile_context>

<pallas_src>
import numpy as np
import jax
import jax.numpy as jnp
from jax.experimental import pallas as pl
from jax.experimental.pallas import tpu as pltpu


def _round_up(x, m):
    return ((x + m - 1) // m) * m


# ----------------------------------------------------------------------------
# Pallas kernel: y = softmax(x @ W + b, axis=-1)
# ----------------------------------------------------------------------------
def _linear_softmax_kernel(x_ref, w_ref, b_ref, o_ref):
    # x_ref : (TM, D)  bf16 tile of input rows
    # w_ref : (D, V)   bf16 weight, resident across the row grid
    # b_ref : (1, V)   f32 bias row
    # o_ref : (TM, V)  f32 output probabilities
    logits = jnp.dot(
        x_ref[...], w_ref[...], preferred_element_type=jnp.float32
    ) + b_ref[...]
    m = jnp.max(logits, axis=-1, keepdims=True)
    e = jnp.exp(logits - m)
    denom = jnp.sum(e, axis=-1, keepdims=True)
    # approx reciprocal -> EUP slot, essentially free after the exp.
    o_ref[...] = (e * pl.reciprocal(denom, approx=True)).astype(o_ref.dtype)


def linear_softmax(x, w, b, *, tm=256):
    """softmax(x @ w + b, axis=-1) via a fused Pallas kernel.

    x: (N, D) float32    w: (D, V) float32    b: (V,) float32
    returns (N, V) float32
    """
    n, d = x.shape
    v = w.shape[1]

    # Row tile: up to 256 rows (MXU-sized on v6e/v7x; multiple of 128 would be
    # the natural v5e granularity).  Clamp to the (8-aligned) problem size so
    # toy shapes don't over-pad.
    tm_eff = min(tm, _round_up(n, 8))
    n_pad = _round_up(n, tm_eff)
    if n_pad != n:
        x = jnp.concatenate([x, jnp.zeros((n_pad - n, d), x.dtype)], axis=0)

    # bf16 MXU inputs (f32 accumulation inside the kernel); halves W traffic.
    x_bf = x.astype(jnp.bfloat16)
    w_bf = w.astype(jnp.bfloat16)
    b2d = b.reshape(1, v).astype(jnp.float32)

    # TODO(synk): for very large vocab sizes on v7x (64 MiB VMEM), tile the
    # vocab axis with an online-softmax accumulator instead of keeping the
    # full (D, V) weight and (tm, V) output resident.
    def run(single_buffer_weights):
        # Weight/bias never change across the row grid -> single-buffer them
        # so VMEM is not wasted on a second copy.
        resident_kwargs = (
            dict(pipeline_mode=pl.Buffered(1)) if single_buffer_weights else {}
        )
        return pl.pallas_call(
            _linear_softmax_kernel,
            out_shape=jax.ShapeDtypeStruct((n_pad, v), jnp.float32),
            grid_spec=pltpu.PrefetchScalarGridSpec(
                num_scalar_prefetch=0,
                grid=(n_pad // tm_eff,),
                in_specs=[
                    pl.BlockSpec((tm_eff, d), lambda i: (i, 0)),
                    pl.BlockSpec((d, v), lambda i: (0, 0), **resident_kwargs),
                    pl.BlockSpec((1, v), lambda i: (0, 0), **resident_kwargs),
                ],
                out_specs=pl.BlockSpec((tm_eff, v), lambda i: (i, 0)),
            ),
            compiler_params=pltpu.CompilerParams(
                dimension_semantics=("parallel",),
                vmem_limit_bytes=64 * 1024 * 1024,
            ),
        )(x_bf, w_bf, b2d)

    try:
        out = run(True)
    except Exception:
        # TODO(synk): pipeline_mode=pl.Buffered(1) not supported by this JAX
        # version; fall back to default double-buffered resident weight.
        out = run(False)

    return out[:n]


# ----------------------------------------------------------------------------
# Frozen "pretrained model" stub (the no_grad path of the original module).
# TODO(synk): the HuggingFace AutoModel encoder-decoder is replaced by a
# deterministic embedding-lookup + tanh projection stub (no checkpoint load).
# ----------------------------------------------------------------------------
def pretrained_stub(input_ids, emb_table, proj):
    h = jnp.take(emb_table, input_ids, axis=0)            # (B, S, D)
    return jnp.tanh(jnp.einsum("bsd,de->bse", h, proj))   # (B, S, D)


# ----------------------------------------------------------------------------
# Full forward (mirrors KnowledgeDistillation.forward)
# ----------------------------------------------------------------------------
def knowledge_distillation_forward(params, input_ids, input_mask,
                                   primal_dual_embeddings):
    B, S, D = primal_dual_embeddings.shape
    max_n = B * S

    # frozen pretrained contextual embeddings
    pre_ctx = pretrained_stub(input_ids, params["emb_table"], params["proj"])

    # masked_select(mask.unsqueeze(-1)).view(-1, D):
    # fixed-capacity, device-side compaction (valid rows first, row-major
    # order, padding rows gather row 0 and are sliced off afterwards).
    mask_flat = input_mask.reshape(-1)
    (sel_idx,) = jnp.nonzero(mask_flat, size=max_n, fill_value=0)

    en_flat = primal_dual_embeddings.reshape(max_n, D)
    pre_flat = pre_ctx.reshape(max_n, D)

    # Stack "en" and "pre" rows -> ONE fused linear+softmax call
    # (weight DMA'd / resident once, per-call overhead paid once).
    x_all = jnp.concatenate(
        [jnp.take(en_flat, sel_idx, axis=0),
         jnp.take(pre_flat, sel_idx, axis=0)], axis=0)     # (2*max_n, D)

    y_all = linear_softmax(x_all, params["wm_w"], params["wm_b"])

    # Single scalar host read to realize the dynamic masked_select shape.
    n_sel = int(jnp.sum(mask_flat))
    y_en = y_all[:max_n][:n_sel]
    y_pre = y_all[max_n:][:n_sel]
    return y_en, y_pre


# ----------------------------------------------------------------------------
# Main
# ----------------------------------------------------------------------------
if __name__ == "__main__":
    B, S, D, V = 2, 8, 32, 128

    key = jax.random.PRNGKey(0)
    k_ids, k_mask, k_emb, k_w, k_b, k_tab, k_proj = jax.random.split(key, 7)

    input_ids = jax.random.randint(k_ids, (B, S), 0, V, dtype=jnp.int32)
    input_mask = jax.random.bernoulli(k_mask, p=0.6, shape=(B, S))
    input_mask = input_mask.at[0, 0].set(True)   # ensure at least one True
    primal_dual_embeddings = jax.random.normal(k_emb, (B, S, D), jnp.float32)

    # Wm: Linear(d_model -> vocab_size), stored pre-transposed as (D, V).
    params = {
        "wm_w": jax.random.normal(k_w, (D, V), jnp.float32) * 0.05,
        "wm_b": jax.random.normal(k_b, (V,), jnp.float32) * 0.01,
        # frozen "pretrained model" stub params
        "emb_table": jax.random.normal(k_tab, (V, D), jnp.float32) * 0.1,
        "proj": jax.random.normal(k_proj, (D, D), jnp.float32) * 0.1,
    }

    y_en, y_pre = knowledge_distillation_forward(
        params, input_ids, input_mask, primal_dual_embeddings
    )
    jax.block_until_ready((y_en, y_pre))

    # ---- sanity checks against a pure-JAX f32 reference -------------------
    mask_np = np.asarray(input_mask, dtype=bool)
    sel = np.argwhere(mask_np)
    n_sel = sel.shape[0]
    b_idx = jnp.asarray(sel[:, 0])
    s_idx = jnp.asarray(sel[:, 1])

    x_en = primal_dual_embeddings[b_idx, s_idx]
    ref_en = jax.nn.softmax(x_en @ params["wm_w"] + params["wm_b"], axis=-1)

    assert y_en.shape == (n_sel, V) and y_pre.shape == (n_sel, V)
    # bf16 MXU inputs + approx reciprocal -> relaxed tolerances vs f32 ref.
    np.testing.assert_allclose(np.asarray(y_en), np.asarray(ref_en),
                               rtol=2e-2, atol=2e-4)
    np.testing.assert_allclose(np.asarray(jnp.sum(y_en, axis=-1)),
                               np.ones(n_sel), rtol=2e-3, atol=2e-3)
    np.testing.assert_allclose(np.asarray(jnp.sum(y_pre, axis=-1)),
                               np.ones(n_sel), rtol=2e-3, atol=2e-3)

    print("KERNEL_OK")
</pallas_src>

<mosaic_0001>
module attributes {stable_mosaic.version = 11 : i64} {
  func.func @_linear_softmax_kernel(%arg0: i32, %arg1: memref<32x32xbf16, #tpu.memory_space<vmem>>, %arg2: memref<32x128xbf16, #tpu.memory_space<vmem>>, %arg3: memref<1x128xf32, #tpu.memory_space<vmem>>, %arg4: memref<32x128xf32, #tpu.memory_space<vmem>>) attributes {dimension_semantics = [#tpu.dimension_semantics<parallel>], iteration_bounds = array<i64: 1>, scalar_prefetch = 0 : i64, scratch_operands = 0 : i64, tpu.core_type = #tpu.core_type<tc>, window_params = [{transform_indices = @transform_0, window_bounds = array<i64: 32, 32>}, {pipeline_mode = #tpu.pipeline_mode<synchronous>, transform_indices = @transform_1, window_bounds = array<i64: 32, 128>}, {pipeline_mode = #tpu.pipeline_mode<synchronous>, transform_indices = @transform_2, window_bounds = array<i64: 1, 128>}, {transform_indices = @transform_3, window_bounds = array<i64: 32, 128>}]} {
    %c0 = arith.constant 0 : index
    %c0_0 = arith.constant 0 : index
    %0 = vector.load %arg1[%c0, %c0_0] : memref<32x32xbf16, #tpu.memory_space<vmem>>, vector<32x32xbf16>
    %c0_1 = arith.constant 0 : index
    %c0_2 = arith.constant 0 : index
    %1 = vector.load %arg2[%c0_1, %c0_2] : memref<32x128xbf16, #tpu.memory_space<vmem>>, vector<32x128xbf16>
    %cst = arith.constant dense<0.000000e+00> : vector<32x128xf32>
    %2 = tpu.matmul %0, %1, %cst {dimension_numbers = #tpu.dot_dimension_numbers<[1], [0], [0], [1], [0, 0, 1, 1], [], []>} : vector<32x32xbf16>, vector<32x128xbf16>, vector<32x128xf32> -> vector<32x128xf32>
    %c0_3 = arith.constant 0 : index
    %c0_4 = arith.constant 0 : index
    %3 = vector.load %arg3[%c0_3, %c0_4] : memref<1x128xf32, #tpu.memory_space<vmem>>, vector<1x128xf32>
    %4 = vector.broadcast %3 : vector<1x128xf32> to vector<32x128xf32>
    %5 = arith.addf %2, %4 : vector<32x128xf32>
    %cst_5 = arith.constant dense<0xFF800000> : vector<32xf32>
    %6 = vector.multi_reduction <maximumf>, %5, %cst_5 [1] : vector<32x128xf32> to vector<32xf32>
    %7 = vector.shape_cast %6 : vector<32xf32> to vector<32x1xf32>
    %8 = vector.broadcast %7 : vector<32x1xf32> to vector<32x128xf32>
    %9 = arith.subf %5, %8 : vector<32x128xf32>
    %10 = math.exp %9 : vector<32x128xf32>
    %cst_6 = arith.constant dense<0.000000e+00> : vector<32xf32>
    %11 = vector.multi_reduction <add>, %10, %cst_6 [1] : vector<32x128xf32> to vector<32xf32>
    %12 = vector.shape_cast %11 : vector<32xf32> to vector<32x1xf32>
    %13 = tpu.reciprocal %12 {approx = true} : vector<32x1xf32> -> vector<32x1xf32>
    %14 = vector.broadcast %13 : vector<32x1xf32> to vector<32x128xf32>
    %15 = arith.mulf %10, %14 : vector<32x128xf32>
    %c0_7 = arith.constant 0 : index
    %c0_8 = arith.constant 0 : index
    %16 = vector.load %arg4[%c0_7, %c0_8] : memref<32x128xf32, #tpu.memory_space<vmem>>, vector<32x128xf32>
    tpu.vector_store %arg4[%c0_7, %c0_8], %15 {strides = array<i32>} : memref<32x128xf32, #tpu.memory_space<vmem>>, vector<32x128xf32>,
    return
  }
  func.func @transform_0(%arg0: i32) -> (i32, i32) {
    %c0_i32 = arith.constant 0 : i32
    %c0_i32_0 = arith.constant 0 : i32
    return %arg0, %c0_i32 : i32, i32
  }
  func.func @transform_1(%arg0: i32) -> (i32, i32) {
    %c0_i32 = arith.constant 0 : i32
    %c0_i32_0 = arith.constant 0 : i32
    %c0_i32_1 = arith.constant 0 : i32
    return %c0_i32, %c0_i32_0 : i32, i32
  }
  func.func @transform_2(%arg0: i32) -> (i32, i32) {
    %c0_i32 = arith.constant 0 : i32
    %c0_i32_0 = arith.constant 0 : i32
    %c0_i32_1 = arith.constant 0 : i32
    return %c0_i32, %c0_i32_0 : i32, i32
  }
  func.func @transform_3(%arg0: i32) -> (i32, i32) {
    %c0_i32 = arith.constant 0 : i32
    %c0_i32_0 = arith.constant 0 : i32
    return %arg0, %c0_i32 : i32, i32
  }
}

module attributes {stable_mosaic.version = 11 : i64} {
  func.func @_linear_softmax_kernel(%arg0: i32, %arg1: memref<32x32xbf16, #tpu.memory_space<vmem>>, %arg2: memref<32x128xbf16, #tpu.memory_space<vmem>>, %arg3: memref<1x128xf32, #tpu.memory_space<vmem>>, %arg4: memref<32x128xf32, #tpu.memory_space<vmem>>) attributes {dimension_semantics = [#tpu.dimension_semantics<parallel>], iteration_bounds = array<i64: 1>, scalar_prefetch = 0 : i64, scratch_operands = 0 : i64, tpu.core_type = #tpu.core_type<tc>, window_params = [{transform_indices = @transform_0, window_bounds = array<i64: 32, 32>}, {pipeline_mode = #tpu.pipeline_mode<synchronous>, transform_indices = @transform_1, window_bounds = array<i64: 32, 128>}, {pipeline_mode = #tpu.pipeline_mode<synchronous>, transform_indices = @transform_2, window_bounds = array<i64: 1, 128>}, {transform_indices = @transform_3, window_bounds = array<i64: 32, 128>}]} {
    %c0 = arith.constant 0 : index
    %c0_0 = arith.constant 0 : index
    %0 = vector.load %arg1[%c0, %c0_0] : memref<32x32xbf16, #tpu.memory_space<vmem>>, vector<32x32xbf16>
    %c0_1 = arith.constant 0 : index
    %c0_2 = arith.constant 0 : index
    %1 = vector.load %arg2[%c0_1, %c0_2] : memref<32x128xbf16, #tpu.memory_space<vmem>>, vector<32x128xbf16>
    %cst = arith.constant dense<0.000000e+00> : vector<32x128xf32>
    %2 = tpu.matmul %0, %1, %cst {dimension_numbers = #tpu.dot_dimension_numbers<[1], [0], [0], [1], [0, 0, 1, 1], [], []>} : vector<32x32xbf16>, vector<32x128xbf16>, vector<32x128xf32> -> vector<32x128xf32>
    %c0_3 = arith.constant 0 : index
    %c0_4 = arith.constant 0 : index
    %3 = vector.load %arg3[%c0_3, %c0_4] : memref<1x128xf32, #tpu.memory_space<vmem>>, vector<1x128xf32>
    %4 = vector.broadcast %3 : vector<1x128xf32> to vector<32x128xf32>
    %5 = arith.addf %2, %4 : vector<32x128xf32>
    %cst_5 = arith.constant dense<0xFF800000> : vector<32xf32>
    %6 = vector.multi_reduction <maximumf>, %5, %cst_5 [1] : vector<32x128xf32> to vector<32xf32>
    %7 = vector.shape_cast %6 : vector<32xf32> to vector<32x1xf32>
    %8 = vector.broadcast %7 : vector<32x1xf32> to vector<32x128xf32>
    %9 = arith.subf %5, %8 : vector<32x128xf32>
    %10 = math.exp %9 : vector<32x128xf32>
    %cst_6 = arith.constant dense<0.000000e+00> : vector<32xf32>
    %11 = vector.multi_reduction <add>, %10, %cst_6 [1] : vector<32x128xf32> to vector<32xf32>
    %12 = vector.shape_cast %11 : vector<32xf32> to vector<32x1xf32>
    %13 = tpu.reciprocal %12 {approx = true} : vector<32x1xf32> -> vector<32x1xf32>
    %14 = vector.broadcast %13 : vector<32x1xf32> to vector<32x128xf32>
    %15 = arith.mulf %10, %14 : vector<32x128xf32>
    %c0_7 = arith.constant 0 : index
    %c0_8 = arith.constant 0 : index
    %16 = vector.load %arg4[%c0_7, %c0_8] : memref<32x128xf32, #tpu.memory_space<vmem>>, vector<32x128xf32>
    tpu.vector_store %arg4[%c0_7, %c0_8], %15 {strides = array<i32>} : memref<32x128xf32, #tpu.memory_space<vmem>>, vector<32x128xf32>,
    return
  }
  func.func @transform_0(%arg0: i32) -> (i32, i32) {
    %c0_i32 = arith.constant 0 : i32
    %c0_i32_0 = arith.constant 0 : i32
    return %arg0, %c0_i32 : i32, i32
  }
  func.func @transform_1(%arg0: i32) -> (i32, i32) {
    %c0_i32 = arith.constant 0 : i32
    %c0_i32_0 = arith.constant 0 : i32
    %c0_i32_1 = arith.constant 0 : i32
    return %c0_i32, %c0_i32_0 : i32, i32
  }
  func.func @transform_2(%arg0: i32) -> (i32, i32) {
    %c0_i32 = arith.constant 0 : i32
    %c0_i32_0 = arith.constant 0 : i32
    %c0_i32_1 = arith.constant 0 : i32
    return %c0_i32, %c0_i32_0 : i32, i32
  }
  func.func @transform_3(%arg0: i32) -> (i32, i32) {
    %c0_i32 = arith.constant 0 : i32
    %c0_i32_0 = arith.constant 0 : i32
    return %arg0, %c0_i32 : i32, i32
  }
}

</mosaic_0001>

<llo_original>
// kernel: tpu_custom_call.1
$region0: #{tpu_custom_call.1}
  #allocation0 [shape = 'u32[]', space=smem, size = 0x4, offset = 0x4, fixed_abs, tag = 'smem constant byte address 0x4 - core index']
  #allocation1 [shape = 'u32[144,128]{1,0:T(1,128)}', space=vmem, size = 0x12000, scoped, tag = 'internal scratch']
  %s0 = inlined_call_operand.hbm [shape: bf16[32,32], index: 0, kind: input, shape index: {}]
  %s1 = inlined_call_operand.hbm [shape: bf16[32,128], index: 1, kind: input, shape index: {}]
  %s2 = inlined_call_operand.hbm [shape: f32[1,128], index: 2, kind: input, shape index: {}]
  %s3 = inlined_call_operand.hbm [shape: f32[32,128], index: 3, kind: output, shape index: {}]
  %s4 = sld [smem:[#allocation0]]
  $region34: #{tpu_custom_call.1} parent=0
    _
  %s6 = ssub.s32 1, %s4
  %s7 = scalar_select 0, %s6, %s4
  $region1: #{tpu_custom_call.1} parent=0
    #allocation2 [shape = 'u8[8192]{0}', space=vmem, size = 0x2000, scoped, tag = 'input window, operand 0, single buffered']
    #allocation3 [shape = 's32[1]{0}', space=sflag, size = 0x4, scoped, tag = 'scoped memory for tpu_custom_call.1']
    #allocation4 [shape = 's32[1]{0}', space=sflag, size = 0x4, scoped, tag = 'scoped memory for tpu_custom_call.1']
    #allocation5 [shape = 'u8[8192]{0}', space=vmem, size = 0x2000, scoped, tag = 'input window, operand 1, single buffered']
    #allocation6 [shape = 's32[1]{0}', space=sflag, size = 0x4, scoped, tag = 'scoped memory for tpu_custom_call.1']
    #allocation7 [shape = 'u8[512]{0}', space=vmem, size = 0x400, scoped, tag = 'input window, operand 2, single buffered']
    #allocation8 [shape = 'u8[16384]{0}', space=vmem, size = 0x4000, scoped, tag = 'output window, operand 0, single buffered']
    %8 = vsyncpa [#allocation3], 0
    %9 = vsyncpa [#allocation6], 0
    %10 = vsyncpa [#allocation4], 0
    // Predicated region
    $region2: #{tpu_custom_call.1} parent=1 // pred_check
      _
    $region3: #{tpu_custom_call.1} parent=1 // pred_check_branch
      %12 = sbr.rel (0) target = $region5
    $region4: #{tpu_custom_call.1} parent=1 // pred_region
      %s14 = ssub.s32 256, 256
      %15 = vsyncadd [#allocation3], %s14
      %s16 = sshll.u32 [#allocation2], 4
      %s17 = int_to_ptr.vmem [resolvable:$true] %s16
      %22 = dma.hbm_to_vmem [thread:$0]  %s0, 256, %s17, [#allocation3], 64, 64, 4
    $region5: #{tpu_custom_call.1} parent=1 // pred_fallthru
      _
    // Predicated region
    $region6: #{tpu_custom_call.1} parent=1 // pred_check
      _
    $region7: #{tpu_custom_call.1} parent=1 // pred_check_branch
      %24 = sbr.rel (0) target = $region9
    $region8: #{tpu_custom_call.1} parent=1 // pred_region
      %s26 = ssub.s32 256, 256
      %27 = vsyncadd [#allocation6], %s26
      %s28 = sshll.u32 [#allocation5], 4
      %s29 = int_to_ptr.vmem [resolvable:$true] %s28
      %34 = dma.hbm_to_vmem [thread:$0]  %s1, 256, %s29, [#allocation6], 64, 64, 4
    $region9: #{tpu_custom_call.1} parent=1 // pred_fallthru
      _
    // Predicated region
    $region10: #{tpu_custom_call.1} parent=1 // pred_check
      _
    $region11: #{tpu_custom_call.1} parent=1 // pred_check_branch
      %36 = sbr.rel (0) target = $region13
    $region12: #{tpu_custom_call.1} parent=1 // pred_region
      %s38 = ssub.s32 16, 16
      %39 = vsyncadd [#allocation6], %s38
      %s41 = sshll.u32 [#allocation7], 4
      %s42 = int_to_ptr.vmem [resolvable:$true] %s41
      %44 = dma.hbm_to_vmem [thread:$0]  %s2, 16, %s42, [#allocation6]
    $region13: #{tpu_custom_call.1} parent=1 // pred_fallthru
      _
    // Predicated region
    $region14: #{tpu_custom_call.1} parent=1 // pred_check
      _
    $region15: #{tpu_custom_call.1} parent=1 // pred_check_branch
      %46 = sbr.rel (0) target = $region17
    $region16: #{tpu_custom_call.1} parent=1 // pred_region
      %47 = dma.done [#allocation3], 256
    $region17: #{tpu_custom_call.1} parent=1 // pred_fallthru
      _
    // Predicated region
    $region18: #{tpu_custom_call.1} parent=1 // pred_check
      _
    $region19: #{tpu_custom_call.1} parent=1 // pred_check_branch
      %49 = sbr.rel (0) target = $region21
    $region20: #{tpu_custom_call.1} parent=1 // pred_region
      %50 = dma.done [#allocation6], 256
    $region21: #{tpu_custom_call.1} parent=1 // pred_fallthru
      _
    // Predicated region
    $region22: #{tpu_custom_call.1} parent=1 // pred_check
      _
    $region23: #{tpu_custom_call.1} parent=1 // pred_check_branch
      %52 = sbr.rel (0) target = $region25
    $region24: #{tpu_custom_call.1} parent=1 // pred_region
      %53 = dma.done [#allocation6], 16
    $region25: #{tpu_custom_call.1} parent=1 // pred_fallthru
      _
    %v55 = vld [vmem:[#allocation2] sm:$0xf]
    %v56 = vld [vmem:[#allocation2 + $0x4] sm:$0xf]
    %v57 = vld [vmem:[#allocation2 + $0x8] sm:$0xf]
    %v58 = vld [vmem:[#allocation2 + $0xc] sm:$0xf]
    %v59 = vld [vmem:[#allocation5] sm:$0xf]
    %v60 = vld [vmem:[#allocation5 + $0x4] sm:$0xf]
    %v61 = vld [vmem:[#allocation5 + $0x8] sm:$0xf]
    %v62 = vld [vmem:[#allocation5 + $0xc] sm:$0xf]
    %v63 = vld [vmem:[#allocation7] sm:$0x1]
    %v65 = vlaneseq
    %v66 = vshrl.u32 %v65, 7
    %v67 = vsub.s32 0, %v66
    %v68 = vrot.slane %v63, %v67
    %v74 = vunpack.c.l.b16 %v55
    %v75 = vunpack.c.l.b16 %v56
    %v76 = vunpack.c.l.b16 %v57
    %v77 = vunpack.c.l.b16 %v58
    %v78 = vpack.c.b16 %v75, %v74
    %v79 = vpack.c.b16 %v77, %v76
    %v84 = vunpack.c.l.b16 %v59
    %v85 = vunpack.c.l.b16 %v60
    %v86 = vunpack.c.l.b16 %v61
    %v87 = vunpack.c.l.b16 %v62
    %v88 = vpack.c.b16 %v85, %v84
    %v89 = vpack.c.b16 %v87, %v86
    %vm92 = vcmask 261120
    %v94 = vsel %vm92, %v78, 0
    %v97 = vsel %vm92, %v79, 0
    %99 = vmatprep.subr.bf16.mxu0 0
    %100 = vmatpush1.bf16.msra.mxu0 %v88
    %101 = vmatprep.subr.bf16.mxu0 0
    %102 = vmatpush1.bf16.msra.mxu0 %v89
    %103 = vmatprep.subr.bf16.mxu0 0
    %104 = vmatpush1.bf16.msra.mxu0 0
    %105 = vmatprep.subr.bf16.mxu0 0
    %106 = vmatpush1.bf16.msra.mxu0 0
    %107 = vmatprep.subr.bf16.mxu0 0
    %108 = vmatpush1.bf16.msra.mxu0 0
    %109 = vmatprep.subr.bf16.mxu0 0
    %110 = vmatpush1.bf16.msra.mxu0 0
    %111 = vmatprep.subr.bf16.mxu0 0
    %112 = vmatpush1.bf16.msra.mxu0 0
    %113 = vmatprep.subr.bf16.mxu0 0
    %114 = vmatpush1.bf16.msra.mxu0 0
    %115 = vmatprep.subr.bf16.mxu0 0
    %116 = vmatpush1.bf16.msra.mxu0 0
    %117 = vmatprep.subr.bf16.mxu0 0
    %118 = vmatpush1.bf16.msra.mxu0 0
    %119 = vmatprep.subr.bf16.mxu0 0
    %120 = vmatpush1.bf16.msra.mxu0 0
    %121 = vmatprep.subr.bf16.mxu0 0
    %122 = vmatpush1.bf16.msra.mxu0 0
    %123 = vmatprep.subr.bf16.mxu0 0
    %124 = vmatpush1.bf16.msra.mxu0 0
    %125 = vmatprep.subr.bf16.mxu0 0
    %126 = vmatpush1.bf16.msra.mxu0 0
    %127 = vmatprep.subr.bf16.mxu0 0
    %128 = vmatpush1.bf16.msra.mxu0 0
    %129 = vmatprep.subr.bf16.mxu0 0
    %130 = vmatpush1.bf16.msra.mxu0 0
    %131 = vmatprep.mubr.bf16.mxu0 0
    %132 = vmatmul.mubr.bf16.gmra.mrb[0].mxu0 %v94
    %v133 = vpop.f32.mrb[0].mxu0
    %v134 = vadd.f32 %v68, %v133
    %v135 = vpop.f32.mrb[0].mxu0
    %v136 = vpop.f32.mrb[0].mxu0
    %v137 = vadd.f32 %v68, %v136
    %v138 = vpop.f32.mrb[0].mxu0
    %139 = vmatprep.mubr.bf16.mxu0 0
    %140 = vmatmul.mubr.bf16.gmra.mrb[0].mxu0 %v97
    %v141 = vpop.f32.mrb[0].mxu0
    %v142 = vadd.f32 %v68, %v141
    %v143 = vpop.f32.mrb[0].mxu0
    %v144 = vpop.f32.mrb[0].mxu0
    %v145 = vadd.f32 %v68, %v144
    %v146 = vpop.f32.mrb[0].mxu0
    %147 = vdwg.mxu0
    %148 = vmax.xlane.f32.xlu0 %v134
    %v149 = vpop.xlane.xlu0 %148
    %150 = vmax.xlane.f32.xlu0 %v137
    %v151 = vpop.xlane.xlu0 %150
    %152 = vmax.xlane.f32.xlu0 %v142
    %v153 = vpop.xlane.xlu0 %152
    %154 = vmax.xlane.f32.xlu0 %v145
    %v155 = vpop.xlane.xlu0 %154
    %v156 = vsub.f32 %v134, %v149
    %v157 = vsub.f32 %v137, %v151
    %v158 = vsub.f32 %v142, %v153
    %v159 = vsub.f32 %v145, %v155
    %v160 = vmul.f32 %v156, 1.442695
    %v161 = vpow.pop %v160
    %v162 = vmul.f32 %v157, 1.442695
    %v163 = vpow.pop %v162
    %v164 = vmul.f32 %v158, 1.442695
    %v165 = vpow.pop %v164
    %v166 = vmul.f32 %v159, 1.442695
    %v167 = vpow.pop %v166
    %168 = vadd.xlane.f32.xlu0 %v161
    %v169 = vpop.xlane.xlu0 %168
    %170 = vadd.xlane.f32.xlu0 %v163
    %v171 = vpop.xlane.xlu0 %170
    %172 = vadd.xlane.f32.xlu0 %v165
    %v173 = vpop.xlane.xlu0 %172
    %174 = vadd.xlane.f32.xlu0 %v167
    %v175 = vpop.xlane.xlu0 %174
    %v176 = vrcp.pop %v169
    %v177 = vrcp.pop %v171
    %v178 = vrcp.pop %v173
    %v179 = vrcp.pop %v175
    %v180 = vmul.f32 %v161, %v176
    %v181 = vmul.f32 %v163, %v177
    %v182 = vmul.f32 %v165, %v178
    %v183 = vmul.f32 %v167, %v179
    %184 = vst [vmem:[#allocation8] sm:$0xff] %v180
    %185 = vst [vmem:[#allocation8 + $0x8] sm:$0xff] %v181
    %186 = vst [vmem:[#allocation8 + $0x10] sm:$0xff] %v182
    %187 = vst [vmem:[#allocation8 + $0x18] sm:$0xff] %v183
    // Predicated region
    $region26: #{tpu_custom_call.1} parent=1 // pred_check
      _
    $region27: #{tpu_custom_call.1} parent=1 // pred_check_branch
      %189 = sbr.rel (0) target = $region29
    $region28: #{tpu_custom_call.1} parent=1 // pred_region
      %s191 = ssub.s32 512, 512
      %192 = vsyncadd [#allocation4], %s191
      %s193 = sshll.u32 [#allocation8], 4
      %s194 = int_to_ptr.vmem [resolvable:$true] %s193
      %199 = dma.vmem_to_hbm [thread:$0]  %s194, 512, %s3, [#allocation4], 128, 128, 8
    $region29: #{tpu_custom_call.1} parent=1 // pred_fallthru
      _
    // Predicated region
    $region30: #{tpu_custom_call.1} parent=1 // pred_check
      _
    $region31: #{tpu_custom_call.1} parent=1 // pred_check_branch
      %201 = sbr.rel (0) target = $region33
    $region32: #{tpu_custom_call.1} parent=1 // pred_region
      %202 = dma.done [#allocation4], 512
    $region33: #{tpu_custom_call.1} parent=1 // pred_fallthru
      _
    %203 = vsyncpa [#allocation3], 1
    %204 = vsyncpa [#allocation6], 1
    %205 = vsyncpa [#allocation4], 1

// kernel: tpu_custom_call.1
$region0: #{tpu_custom_call.1}
  #allocation0 [shape = 'u32[]', space=smem, size = 0x4, offset = 0x4, fixed_abs, tag = 'smem constant byte address 0x4 - core index']
  #allocation1 [shape = 'u32[144,128]{1,0:T(1,128)}', space=vmem, size = 0x12000, scoped, tag = 'internal scratch']
  %s0 = inlined_call_operand.hbm [shape: bf16[32,32], index: 0, kind: input, shape index: {}]
  %s1 = inlined_call_operand.hbm [shape: bf16[32,128], index: 1, kind: input, shape index: {}]
  %s2 = inlined_call_operand.hbm [shape: f32[1,128], index: 2, kind: input, shape index: {}]
  %s3 = inlined_call_operand.hbm [shape: f32[32,128], index: 3, kind: output, shape index: {}]
  %s4 = sld [smem:[#allocation0]]
  $region34: #{tpu_custom_call.1} parent=0
    _
  %s6 = ssub.s32 1, %s4
  %s7 = scalar_select 0, %s6, %s4
  $region1: #{tpu_custom_call.1} parent=0
    #allocation2 [shape = 'u8[8192]{0}', space=vmem, size = 0x2000, scoped, tag = 'input window, operand 0, single buffered']
    #allocation3 [shape = 's32[1]{0}', space=sflag, size = 0x4, scoped, tag = 'scoped memory for tpu_custom_call.1']
    #allocation4 [shape = 's32[1]{0}', space=sflag, size = 0x4, scoped, tag = 'scoped memory for tpu_custom_call.1']
    #allocation5 [shape = 'u8[8192]{0}', space=vmem, size = 0x2000, scoped, tag = 'input window, operand 1, single buffered']
    #allocation6 [shape = 's32[1]{0}', space=sflag, size = 0x4, scoped, tag = 'scoped memory for tpu_custom_call.1']
    #allocation7 [shape = 'u8[512]{0}', space=vmem, size = 0x400, scoped, tag = 'input window, operand 2, single buffered']
    #allocation8 [shape = 'u8[16384]{0}', space=vmem, size = 0x4000, scoped, tag = 'output window, operand 0, single buffered']
    %8 = vsyncpa [#allocation3], 0
    %9 = vsyncpa [#allocation6], 0
    %10 = vsyncpa [#allocation4], 0
    // Predicated region
    $region2: #{tpu_custom_call.1} parent=1 // pred_check
      _
    $region3: #{tpu_custom_call.1} parent=1 // pred_check_branch
      %12 = sbr.rel (0) target = $region5
    $region4: #{tpu_custom_call.1} parent=1 // pred_region
      %s14 = ssub.s32 256, 256
      %15 = vsyncadd [#allocation3], %s14
      %s16 = sshll.u32 [#allocation2], 4
      %s17 = int_to_ptr.vmem [resolvable:$true] %s16
      %22 = dma.hbm_to_vmem [thread:$0]  %s0, 256, %s17, [#allocation3], 64, 64, 4
    $region5: #{tpu_custom_call.1} parent=1 // pred_fallthru
      _
    // Predicated region
    $region6: #{tpu_custom_call.1} parent=1 // pred_check
      _
    $region7: #{tpu_custom_call.1} parent=1 // pred_check_branch
      %24 = sbr.rel (0) target = $region9
    $region8: #{tpu_custom_call.1} parent=1 // pred_region
      %s26 = ssub.s32 256, 256
      %27 = vsyncadd [#allocation6], %s26
      %s28 = sshll.u32 [#allocation5], 4
      %s29 = int_to_ptr.vmem [resolvable:$true] %s28
      %34 = dma.hbm_to_vmem [thread:$0]  %s1, 256, %s29, [#allocation6], 64, 64, 4
    $region9: #{tpu_custom_call.1} parent=1 // pred_fallthru
      _
    // Predicated region
    $region10: #{tpu_custom_call.1} parent=1 // pred_check
      _
    $region11: #{tpu_custom_call.1} parent=1 // pred_check_branch
      %36 = sbr.rel (0) target = $region13
    $region12: #{tpu_custom_call.1} parent=1 // pred_region
      %s38 = ssub.s32 16, 16
      %39 = vsyncadd [#allocation6], %s38
      %s41 = sshll.u32 [#allocation7], 4
      %s42 = int_to_ptr.vmem [resolvable:$true] %s41
      %44 = dma.hbm_to_vmem [thread:$0]  %s2, 16, %s42, [#allocation6]
    $region13: #{tpu_custom_call.1} parent=1 // pred_fallthru
      _
    // Predicated region
    $region14: #{tpu_custom_call.1} parent=1 // pred_check
      _
    $region15: #{tpu_custom_call.1} parent=1 // pred_check_branch
      %46 = sbr.rel (0) target = $region17
    $region16: #{tpu_custom_call.1} parent=1 // pred_region
      %47 = dma.done [#allocation3], 256
    $region17: #{tpu_custom_call.1} parent=1 // pred_fallthru
      _
    // Predicated region
    $region18: #{tpu_custom_call.1} parent=1 // pred_check
      _
    $region19: #{tpu_custom_call.1} parent=1 // pred_check_branch
      %49 = sbr.rel (0) target = $region21
    $region20: #{tpu_custom_call.1} parent=1 // pred_region
      %50 = dma.done [#allocation6], 256
    $region21: #{tpu_custom_call.1} parent=1 // pred_fallthru
      _
    // Predicated region
    $region22: #{tpu_custom_call.1} parent=1 // pred_check
      _
    $region23: #{tpu_custom_call.1} parent=1 // pred_check_branch
      %52 = sbr.rel (0) target = $region25
    $region24: #{tpu_custom_call.1} parent=1 // pred_region
      %53 = dma.done [#allocation6], 16
    $region25: #{tpu_custom_call.1} parent=1 // pred_fallthru
      _
    %v55 = vld [vmem:[#allocation2] sm:$0xf]
    %v56 = vld [vmem:[#allocation2 + $0x4] sm:$0xf]
    %v57 = vld [vmem:[#allocation2 + $0x8] sm:$0xf]
    %v58 = vld [vmem:[#allocation2 + $0xc] sm:$0xf]
    %v59 = vld [vmem:[#allocation5] sm:$0xf]
    %v60 = vld [vmem:[#allocation5 + $0x4] sm:$0xf]
    %v61 = vld [vmem:[#allocation5 + $0x8] sm:$0xf]
    %v62 = vld [vmem:[#allocation5 + $0xc] sm:$0xf]
    %v63 = vld [vmem:[#allocation7] sm:$0x1]
    %v65 = vlaneseq
    %v66 = vshrl.u32 %v65, 7
    %v67 = vsub.s32 0, %v66
    %v68 = vrot.slane %v63, %v67
    %v74 = vunpack.c.l.b16 %v55
    %v75 = vunpack.c.l.b16 %v56
    %v76 = vunpack.c.l.b16 %v57
    %v77 = vunpack.c.l.b16 %v58
    %v78 = vpack.c.b16 %v75, %v74
    %v79 = vpack.c.b16 %v77, %v76
    %v84 = vunpack.c.l.b16 %v59
    %v85 = vunpack.c.l.b16 %v60
    %v86 = vunpack.c.l.b16 %v61
    %v87 = vunpack.c.l.b16 %v62
    %v88 = vpack.c.b16 %v85, %v84
    %v89 = vpack.c.b16 %v87, %v86
    %vm92 = vcmask 261120
    %v94 = vsel %vm92, %v78, 0
    %v97 = vsel %vm92, %v79, 0
    %99 = vmatprep.subr.bf16.mxu0 0
    %100 = vmatpush1.bf16.msra.mxu0 %v88
    %101 = vmatprep.subr.bf16.mxu0 0
    %102 = vmatpush1.bf16.msra.mxu0 %v89
    %103 = vmatprep.subr.bf16.mxu0 0
    %104 = vmatpush1.bf16.msra.mxu0 0
    %105 = vmatprep.subr.bf16.mxu0 0
    %106 = vmatpush1.bf16.msra.mxu0 0
    %107 = vmatprep.subr.bf16.mxu0 0
    %108 = vmatpush1.bf16.msra.mxu0 0
    %109 = vmatprep.subr.bf16.mxu0 0
    %110 = vmatpush1.bf16.msra.mxu0 0
    %111 = vmatprep.subr.bf16.mxu0 0
    %112 = vmatpush1.bf16.msra.mxu0 0
    %113 = vmatprep.subr.bf16.mxu0 0
    %114 = vmatpush1.bf16.msra.mxu0 0
    %115 = vmatprep.subr.bf16.mxu0 0
    %116 = vmatpush1.bf16.msra.mxu0 0
    %117 = vmatprep.subr.bf16.mxu0 0
    %118 = vmatpush1.bf16.msra.mxu0 0
    %119 = vmatprep.subr.bf16.mxu0 0
    %120 = vmatpush1.bf16.msra.mxu0 0
    %121 = vmatprep.subr.bf16.mxu0 0
    %122 = vmatpush1.bf16.msra.mxu0 0
    %123 = vmatprep.subr.bf16.mxu0 0
    %124 = vmatpush1.bf16.msra.mxu0 0
    %125 = vmatprep.subr.bf16.mxu0 0
    %126 = vmatpush1.bf16.msra.mxu0 0
    %127 = vmatprep.subr.bf16.mxu0 0
    %128 = vmatpush1.bf16.msra.mxu0 0
    %129 = vmatprep.subr.bf16.mxu0 0
    %130 = vmatpush1.bf16.msra.mxu0 0
    %131 = vmatprep.mubr.bf16.mxu0 0
    %132 = vmatmul.mubr.bf16.gmra.mrb[0].mxu0 %v94
    %v133 = vpop.f32.mrb[0].mxu0
    %v134 = vadd.f32 %v68, %v133
    %v135 = vpop.f32.mrb[0].mxu0
    %v136 = vpop.f32.mrb[0].mxu0
    %v137 = vadd.f32 %v68, %v136
    %v138 = vpop.f32.mrb[0].mxu0
    %139 = vmatprep.mubr.bf16.mxu0 0
    %140 = vmatmul.mubr.bf16.gmra.mrb[0].mxu0 %v97
    %v141 = vpop.f32.mrb[0].mxu0
    %v142 = vadd.f32 %v68, %v141
    %v143 = vpop.f32.mrb[0].mxu0
    %v144 = vpop.f32.mrb[0].mxu0
    %v145 = vadd.f32 %v68, %v144
    %v146 = vpop.f32.mrb[0].mxu0
    %147 = vdwg.mxu0
    %148 = vmax.xlane.f32.xlu0 %v134
    %v149 = vpop.xlane.xlu0 %148
    %150 = vmax.xlane.f32.xlu0 %v137
    %v151 = vpop.xlane.xlu0 %150
    %152 = vmax.xlane.f32.xlu0 %v142
    %v153 = vpop.xlane.xlu0 %152
    %154 = vmax.xlane.f32.xlu0 %v145
    %v155 = vpop.xlane.xlu0 %154
    %v156 = vsub.f32 %v134, %v149
    %v157 = vsub.f32 %v137, %v151
    %v158 = vsub.f32 %v142, %v153
    %v159 = vsub.f32 %v145, %v155
    %v160 = vmul.f32 %v156, 1.442695
    %v161 = vpow.pop %v160
    %v162 = vmul.f32 %v157, 1.442695
    %v163 = vpow.pop %v162
    %v164 = vmul.f32 %v158, 1.442695
    %v165 = vpow.pop %v164
    %v166 = vmul.f32 %v159, 1.442695
    %v167 = vpow.pop %v166
    %168 = vadd.xlane.f32.xlu0 %v161
    %v169 = vpop.xlane.xlu0 %168
    %170 = vadd.xlane.f32.xlu0 %v163
    %v171 = vpop.xlane.xlu0 %170
    %172 = vadd.xlane.f32.xlu0 %v165
    %v173 = vpop.xlane.xlu0 %172
    %174 = vadd.xlane.f32.xlu0 %v167
    %v175 = vpop.xlane.xlu0 %174
    %v176 = vrcp.pop %v169
    %v177 = vrcp.pop %v171
    %v178 = vrcp.pop %v173
    %v179 = vrcp.pop %v175
    %v180 = vmul.f32 %v161, %v176
    %v181 = vmul.f32 %v163, %v177
    %v182 = vmul.f32 %v165, %v178
    %v183 = vmul.f32 %v167, %v179
    %184 = vst [vmem:[#allocation8] sm:$0xff] %v180
    %185 = vst [vmem:[#allocation8 + $0x8] sm:$0xff] %v181
    %186 = vst [vmem:[#allocation8 + $0x10] sm:$0xff] %v182
    %187 = vst [vmem:[#allocation8 + $0x18] sm:$0xff] %v183
    // Predicated region
    $region26: #{tpu_custom_call.1} parent=1 // pred_check
      _
    $region27: #{tpu_custom_call.1} parent=1 // pred_check_branch
      %189 = sbr.rel (0) target = $region29
    $region28: #{tpu_custom_call.1} parent=1 // pred_region
      %s191 = ssub.s32 512, 512
      %192 = vsyncadd [#allocation4], %s191
      %s193 = sshll.u32 [#allocation8], 4
      %s194 = int_to_ptr.vmem [resolvable:$true] %s193
      %199 = dma.vmem_to_hbm [thread:$0]  %s194, 512, %s3, [#allocation4], 128, 128, 8
    $region29: #{tpu_custom_call.1} parent=1 // pred_fallthru
      _
    // Predicated region
    $region30: #{tpu_custom_call.1} parent=1 // pred_check
      _
    $region31: #{tpu_custom_call.1} parent=1 // pred_check_branch
      %201 = sbr.rel (0) target = $region33
    $region32: #{tpu_custom_call.1} parent=1 // pred_region
      %202 = dma.done [#allocation4], 512
    $region33: #{tpu_custom_call.1} parent=1 // pred_fallthru
      _
    %203 = vsyncpa [#allocation3], 1
    %204 = vsyncpa [#allocation6], 1
    %205 = vsyncpa [#allocation4], 1

</llo_original>
